<compile_context>
chip_gen: v5e
topology: v5e:2x2
jax: 0.10.0
libtpu: 0.0.40
codegen_flags: <defaults>
</compile_context>

<pallas_src>
import functools

import jax
import jax.numpy as jnp
from jax.experimental import pallas as pl
from jax.experimental.pallas import tpu as pltpu

MIB = 1024 * 1024


# --------------------------------------------------------------------------- kernels
def _resident_kernel(x_ref, w_ref, v_ref, o_ref, *, scale, normalize, eps):
    """Whole-K path: W is VMEM-resident (constant block index -> one HBM read)."""
    x32 = x_ref[...].astype(jnp.float32)                       # (tm, H)
    var = jnp.mean(x32 * x32, axis=-1, keepdims=True)
    xn = (x32 * jax.lax.rsqrt(var + eps)).astype(x_ref.dtype)  # bf16-friendly MXU feed
    h = jnp.dot(xn, w_ref[...], preferred_element_type=jnp.float32) + x32
    steered = h + scale * v_ref[...].astype(jnp.float32)
    if normalize:
        h_norm = jnp.sqrt(jnp.sum(h * h, axis=-1, keepdims=True))
        s_norm = jnp.sqrt(jnp.sum(steered * steered, axis=-1, keepdims=True))
        steered = steered * (h_norm / (s_norm + 1e-8))          # matches reference eps
    o_ref[...] = steered.astype(o_ref.dtype)


def _ktiled_kernel(x_ref, w_ref, v_ref, o_ref, acc_ref, inv_rms_ref, *,
                   scale, normalize, eps, tk):
    """K-tiled path for large H: f32 VMEM accumulator, reduction axis last."""
    k = pl.program_id(1)
    nk = pl.num_programs(1)

    @pl.when(k == 0)
    def _():
        acc_ref[...] = jnp.zeros_like(acc_ref)
        x32 = x_ref[...].astype(jnp.float32)
        var = jnp.mean(x32 * x32, axis=-1, keepdims=True)
        inv_rms_ref[...] = jax.lax.rsqrt(var + eps)

    off = pl.multiple_of(k * tk, tk)
    x_k = x_ref[:, pl.ds(off, tk)]                              # (tm, tk) native dtype
    xn_k = (x_k.astype(jnp.float32) * inv_rms_ref[...]).astype(x_ref.dtype)
    # TODO(synk): on v7x an in-kernel K loop (pltpu.emit_pipeline) would let the MXU
    #             accumulate in the MRB and drop this f32 VMEM read-modify-write; the
    #             resident-W path already avoids it for H <= ~4096.
    acc_ref[...] += jnp.dot(xn_k, w_ref[...], preferred_element_type=jnp.float32)

    @pl.when(k == nk - 1)
    def _():
        h = acc_ref[...] + x_ref[...].astype(jnp.float32)
        steered = h + scale * v_ref[...].astype(jnp.float32)
        if normalize:
            h_norm = jnp.sqrt(jnp.sum(h * h, axis=-1, keepdims=True))
            s_norm = jnp.sqrt(jnp.sum(steered * steered, axis=-1, keepdims=True))
            steered = steered * (h_norm / (s_norm + 1e-8))
        o_ref[...] = steered.astype(o_ref.dtype)


def _ntiled_kernel(x_ref, w_ref, v_ref, o_ref, hsq_ref, ssq_ref, *, scale, eps, tn):
    """Decode path: output-column tiles on a 'parallel' grid axis (v7x dual-TC).
    Emits per-tile partial squared norms; normalize rescale finishes in the wrapper."""
    n = pl.program_id(0)
    x32 = x_ref[...].astype(jnp.float32)                        # (T, H) resident
    var = jnp.mean(x32 * x32, axis=-1, keepdims=True)
    xn = (x32 * jax.lax.rsqrt(var + eps)).astype(x_ref.dtype)
    off = pl.multiple_of(n * tn, tn)
    x_res = x_ref[:, pl.ds(off, tn)].astype(jnp.float32)        # residual slice
    h = jnp.dot(xn, w_ref[...], preferred_element_type=jnp.float32) + x_res
    steered = h + scale * v_ref[...].astype(jnp.float32)
    o_ref[...] = steered.astype(o_ref.dtype)
    hsq_ref[...] = jnp.sum(h * h, axis=-1, keepdims=True)[None]             # (1, T, 1)
    ssq_ref[...] = jnp.sum(steered * steered, axis=-1, keepdims=True)[None]


# --------------------------------------------------------------------------- helpers
def _device_profile():
    kind = ""
    try:
        kind = jax.devices()[0].device_kind.lower()
    except Exception:  # pragma: no cover
        pass
    cap = None
    try:
        cap = int(pltpu.get_tpu_info().vmem_capacity_bytes)
    except Exception:  # pragma: no cover
        cap = None
    is_v7 = "v7" in kind
    is_v6 = "v6" in kind
    is_v5e = ("v5e" in kind) or ("v5 lite" in kind) or ("v5lite" in kind)
    if cap is None:
        cap = 128 * MIB if (is_v6 or is_v5e) else 64 * MIB   # conservative default
    return kind, cap, is_v7, is_v6, is_v5e


def _pick_tile(total, preferred, align):
    """Largest tile <= preferred that divides `total` and is align-multiple (or == total)."""
    t = max(1, min(int(preferred), int(total)))
    if total % t == 0 and (t == total or t % align == 0):
        return t
    c = (t // align) * align
    while c >= align:
        if total % c == 0:
            return c
        c -= align
    return total


# --------------------------------------------------------------------------- wrapper
def decoder_layer_with_steer_vector(x, w, steer_vec, *, scale=1.0, normalize=True,
                                    eps=1e-6, tm=None, tk=None, tn=None, path=None):
    """x: [T, H] hidden states; w: [H, H] base-layer weight; steer_vec: [1, H]."""
    T, H = x.shape
    assert w.shape == (H, H)
    assert steer_vec.shape == (1, H)

    _, vmem_cap, is_v7, is_v6, is_v5e = _device_profile()
    # Never claim the full physical VMEM (esp. v7x 64 MiB): leave Mosaic headroom.
    vmem_limit = max(32 * MIB, min(vmem_cap - 16 * MIB, 112 * MIB))
    budget = vmem_limit - 4 * MIB

    xsize = x.dtype.itemsize
    wsize = w.dtype.itemsize
    vsize = steer_vec.dtype.itemsize
    m_align = 8 * max(1, 4 // xsize)        # 8 f32 / 16 bf16 / 32 int8-fp8 sublane packing

    flops = 2 * T * H * H
    trans = (3 * T) if normalize else T
    kw = dict(scale=float(scale), normalize=bool(normalize), eps=float(eps))

    # -------- path selection --------
    resident_tm = _pick_tile(T, tm if tm is not None else 256, m_align)
    resident_bytes = (2 * H * H * wsize              # W double-buffer alloc (1 HBM read)
                      + 4 * resident_tm * H * xsize  # x in + out, double-buffered
                      + 2 * resident_tm * H * 4      # f32 temporaries (h, steered)
                      + 2 * H * vsize)
    if path is None:
        if is_v7 and T <= 256 and H >= 1024:
            path = "ntiled"                          # give the 2nd TensorCore work on decode
        elif resident_bytes <= budget:
            path = "resident"
        else:
            path = "ktiled"

    # ---------------------------------------------------------------- resident-W path
    if path == "resident":
        tm_ = resident_tm
        cost = pl.CostEstimate(flops=flops, transcendentals=trans,
                               bytes_accessed=2 * T * H * xsize + H * H * wsize + H * vsize)
        return pl.pallas_call(
            functools.partial(_resident_kernel, **kw),
            out_shape=jax.ShapeDtypeStruct((T, H), x.dtype),
            grid_spec=pltpu.PrefetchScalarGridSpec(
                num_scalar_prefetch=0,
                grid=(T // tm_,),
                in_specs=[
                    pl.BlockSpec((tm_, H), lambda i: (i, 0)),   # token tile
                    pl.BlockSpec((H, H), lambda i: (0, 0)),     # W resident (constant index)
                    pl.BlockSpec((1, H), lambda i: (0, 0)),     # steer vector resident
                ],
                out_specs=pl.BlockSpec((tm_, H), lambda i: (i, 0)),
            ),
            compiler_params=pltpu.CompilerParams(
                dimension_semantics=("parallel",),
                vmem_limit_bytes=vmem_limit),
            cost_estimate=cost,
        )(x, w, steer_vec)

    # ---------------------------------------------------------------- K-tiled path
    if path == "ktiled":
        tm_ = _pick_tile(T, tm if tm is not None else (256 if is_v7 else 512), m_align)
        tk_ = _pick_tile(H, tk if tk is not None else (256 if is_v7 else 512), 128)
        wbuf = 3 if (is_v6 or is_v5e) else 2          # deeper W buffering where VMEM is plentiful

        def kfoot(tm_x, tk_x, wb):
            return (4 * tm_x * H * xsize + wb * tk_x * H * wsize
                    + tm_x * H * 4 + 2 * tm_x * H * 4 + tm_x * 4 + 2 * H * vsize)

        while kfoot(tm_, tk_, wbuf) > budget:
            if wbuf > 2:
                wbuf = 2
                continue
            new_tm = _pick_tile(T, max(m_align, tm_ // 2), m_align)
            if new_tm < tm_:
                tm_ = new_tm
                continue
            new_tk = _pick_tile(H, max(128, tk_ // 2), 128)
            if new_tk < tk_:
                tk_ = new_tk
                continue
            break

        assert T % tm_ == 0 and H % tk_ == 0
        nk = H // tk_
        cost = pl.CostEstimate(
            flops=flops, transcendentals=trans,
            bytes_accessed=2 * T * H * xsize + (T // tm_) * H * H * wsize + H * vsize)

        w_spec_plain = pl.BlockSpec((tk_, H), lambda i, k: (k, 0))
        w_spec_buf = None
        if wbuf > 2 and nk >= wbuf:
            try:
                w_spec_buf = pl.BlockSpec((tk_, H), lambda i, k: (k, 0),
                                          pipeline_mode=pl.Buffered(wbuf))
            except TypeError:   # older BlockSpec without pipeline_mode
                w_spec_buf = None

        def _ktiled_call(w_spec):
            return pl.pallas_call(
                functools.partial(_ktiled_kernel, tk=tk_, **kw),
                out_shape=jax.ShapeDtypeStruct((T, H), x.dtype),
                grid_spec=pltpu.PrefetchScalarGridSpec(
                    num_scalar_prefetch=0,
                    grid=(T // tm_, nk),                       # reduction (K) axis last
                    in_specs=[
                        pl.BlockSpec((tm_, H), lambda i, k: (i, 0)),
                        w_spec,
                        pl.BlockSpec((1, H), lambda i, k: (0, 0)),
                    ],
                    out_specs=pl.BlockSpec((tm_, H), lambda i, k: (i, 0)),
                    scratch_shapes=[
                        pltpu.VMEM((tm_, H), jnp.float32),     # f32 matmul accumulator
                        pltpu.VMEM((tm_, 1), jnp.float32),     # per-token 1/rms
                    ],
                ),
                compiler_params=pltpu.CompilerParams(
                    dimension_semantics=("parallel", "arbitrary"),
                    vmem_limit_bytes=vmem_limit),
                cost_estimate=cost,
            )(x, w, steer_vec)

        if w_spec_buf is not None:
            try:
                return _ktiled_call(w_spec_buf)
            except Exception:   # fall back if deeper W buffering is unsupported
                pass
        return _ktiled_call(w_spec_plain)

    # ---------------------------------------------------------------- N-tiled decode path
    assert path == "ntiled"
    tn_ = _pick_tile(H, tn if tn is not None else 512, 128)

    def nfoot(tn_x):
        return (2 * T * H * xsize + 2 * H * tn_x * wsize + 2 * T * tn_x * xsize
                + 2 * T * H * 4 + 2 * T * tn_x * 4 + 2 * tn_x * vsize)

    while nfoot(tn_) > budget:
        new_tn = _pick_tile(H, max(128, tn_ // 2), 128)
        if new_tn < tn_:
            tn_ = new_tn
        else:
            break
    assert H % tn_ == 0
    nt = H // tn_
    cost = pl.CostEstimate(flops=flops, transcendentals=trans,
                           bytes_accessed=2 * T * H * xsize + H * H * wsize + H * vsize)

    steered, hsq, ssq = pl.pallas_call(
        functools.partial(_ntiled_kernel, scale=float(scale), eps=float(eps), tn=tn_),
        out_shape=(jax.ShapeDtypeStruct((T, H), x.dtype),
                   jax.ShapeDtypeStruct((nt, T, 1), jnp.float32),
                   jax.ShapeDtypeStruct((nt, T, 1), jnp.float32)),
        grid_spec=pltpu.PrefetchScalarGridSpec(
            num_scalar_prefetch=0,
            grid=(nt,),
            in_specs=[
                pl.BlockSpec((T, H), lambda n: (0, 0)),        # hidden states resident
                pl.BlockSpec((H, tn_), lambda n: (0, n)),      # W column slab
                pl.BlockSpec((1, tn_), lambda n: (0, n)),      # steer vector slab
            ],
            out_specs=(
                pl.BlockSpec((T, tn_), lambda n: (0, n)),
                pl.BlockSpec((1, T, 1), lambda n: (n, 0, 0)),
                pl.BlockSpec((1, T, 1), lambda n: (n, 0, 0)),
            ),
        ),
        compiler_params=pltpu.CompilerParams(
            dimension_semantics=("parallel",),                  # split column tiles across TCs
            vmem_limit_bytes=vmem_limit),
        cost_estimate=cost,
    )(x, w, steer_vec)

    if not normalize:
        return steered
    h_norm = jnp.sqrt(jnp.sum(hsq, axis=0))                     # (T, 1)
    s_norm = jnp.sqrt(jnp.sum(ssq, axis=0))
    out = steered.astype(jnp.float32) * (h_norm / (s_norm + 1e-8))
    return out.astype(x.dtype)


# --------------------------------------------------------------------------- reference
def _reference(x, w, steer_vec, scale, normalize, eps):
    x32 = x.astype(jnp.float32)
    var = jnp.mean(x32 * x32, axis=-1, keepdims=True)
    xn = x32 * jax.lax.rsqrt(var + eps)
    h = xn @ w.astype(jnp.float32) + x32
    steered = h + scale * steer_vec.astype(jnp.float32)
    if normalize:
        h_norm = jnp.linalg.norm(h, axis=-1, keepdims=True)
        s_norm = jnp.linalg.norm(steered, axis=-1, keepdims=True)
        steered = steered * (h_norm / (s_norm + 1e-8))
    return steered.astype(x.dtype)


if __name__ == "__main__":
    # Small shapes: 16 tokens, hidden=384 (3 x 128 lanes -> exercises 3 K/N slabs).
    T, H = 16, 384
    key = jax.random.PRNGKey(0)
    kx, kw, kv = jax.random.split(key, 3)
    x = jax.random.normal(kx, (T, H), dtype=jnp.float32)
    w = jax.random.normal(kw, (H, H), dtype=jnp.float32) * 0.05
    steer_vec = jax.random.normal(kv, (1, H), dtype=jnp.float32)

    ref_n = _reference(x, w, steer_vec, 2.0, True, 1e-6)
    ref_u = _reference(x, w, steer_vec, 0.5, False, 1e-6)

    # 1) auto path selection (resident-W at this size)
    out = jax.block_until_ready(decoder_layer_with_steer_vector(
        x, w, steer_vec, scale=2.0, normalize=True))
    assert out.shape == (T, H)
    assert jnp.allclose(out, ref_n, atol=1e-3, rtol=1e-3), "mismatch (auto, normalize=True)"

    out_u = jax.block_until_ready(decoder_layer_with_steer_vector(
        x, w, steer_vec, scale=0.5, normalize=False))
    assert jnp.allclose(out_u, ref_u, atol=1e-3, rtol=1e-3), "mismatch (auto, normalize=False)"

    # 2) K-tiled large-H fallback, forced (3 K slabs, f32 accumulator)
    out_k = jax.block_until_ready(decoder_layer_with_steer_vector(
        x, w, steer_vec, scale=2.0, normalize=True, path="ktiled", tk=128))
    assert jnp.allclose(out_k, ref_n, atol=1e-3, rtol=1e-3), "mismatch (ktiled)"

    # 3) N-tiled decode path (v7x dual-TensorCore), forced (3 column slabs)
    out_n = jax.block_until_ready(decoder_layer_with_steer_vector(
        x, w, steer_vec, scale=2.0, normalize=True, path="ntiled", tn=128))
    assert jnp.allclose(out_n, ref_n, atol=1e-3, rtol=1e-3), "mismatch (ntiled, normalize=True)"

    out_n0 = jax.block_until_ready(decoder_layer_with_steer_vector(
        x, w, steer_vec, scale=0.5, normalize=False, path="ntiled", tn=128))
    assert jnp.allclose(out_n0, ref_u, atol=1e-3, rtol=1e-3), "mismatch (ntiled, normalize=False)"

    print("KERNEL_OK")
</pallas_src>

<mosaic_0001>
module attributes {stable_mosaic.version = 11 : i64} {
  func.func @_resident_kernel(%arg0: i32, %arg1: memref<16x384xf32, #tpu.memory_space<vmem>>, %arg2: memref<384x384xf32, #tpu.memory_space<vmem>>, %arg3: memref<1x384xf32, #tpu.memory_space<vmem>>, %arg4: memref<16x384xf32, #tpu.memory_space<vmem>>) attributes {dimension_semantics = [#tpu.dimension_semantics<parallel>], iteration_bounds = array<i64: 1>, scalar_prefetch = 0 : i64, scratch_operands = 0 : i64, tpu.core_type = #tpu.core_type<tc>, window_params = [{transform_indices = @transform_0, window_bounds = array<i64: 16, 384>}, {pipeline_mode = #tpu.pipeline_mode<synchronous>, transform_indices = @transform_1, window_bounds = array<i64: 384, 384>}, {pipeline_mode = #tpu.pipeline_mode<synchronous>, transform_indices = @transform_2, window_bounds = array<i64: 1, 384>}, {transform_indices = @transform_3, window_bounds = array<i64: 16, 384>}]} {
    %c0 = arith.constant 0 : index
    %c0_0 = arith.constant 0 : index
    %0 = vector.load %arg1[%c0, %c0_0] : memref<16x384xf32, #tpu.memory_space<vmem>>, vector<16x384xf32>
    %1 = arith.mulf %0, %0 : vector<16x384xf32>
    %cst = arith.constant dense<0.000000e+00> : vector<16xf32>
    %2 = vector.multi_reduction <add>, %1, %cst [1] : vector<16x384xf32> to vector<16xf32>
    %3 = vector.shape_cast %2 : vector<16xf32> to vector<16x1xf32>
    %cst_1 = arith.constant 3.840000e+02 : f32
    %4 = vector.broadcast %cst_1 : f32 to vector<16x1xf32>
    %5 = arith.divf %3, %4 : vector<16x1xf32>
    %cst_2 = arith.constant 9.99999997E-7 : f32
    %6 = vector.broadcast %cst_2 : f32 to vector<16x1xf32>
    %7 = arith.addf %5, %6 : vector<16x1xf32>
    %8 = math.rsqrt %7 : vector<16x1xf32>
    %9 = vector.broadcast %8 : vector<16x1xf32> to vector<16x384xf32>
    %10 = arith.mulf %0, %9 : vector<16x384xf32>
    %c0_3 = arith.constant 0 : index
    %c0_4 = arith.constant 0 : index
    %11 = vector.load %arg2[%c0_3, %c0_4] : memref<384x384xf32, #tpu.memory_space<vmem>>, vector<384x384xf32>
    %cst_5 = arith.constant dense<0.000000e+00> : vector<16x384xf32>
    %12 = tpu.matmul %10, %11, %cst_5 {dimension_numbers = #tpu.dot_dimension_numbers<[1], [0], [0], [1], [0, 0, 1, 1], [], []>} : vector<16x384xf32>, vector<384x384xf32>, vector<16x384xf32> -> vector<16x384xf32>
    %13 = arith.addf %12, %0 : vector<16x384xf32>
    %c0_6 = arith.constant 0 : index
    %c0_7 = arith.constant 0 : index
    %14 = vector.load %arg3[%c0_6, %c0_7] : memref<1x384xf32, #tpu.memory_space<vmem>>, vector<1x384xf32>
    %cst_8 = arith.constant 2.000000e+00 : f32
    %15 = vector.broadcast %cst_8 : f32 to vector<1x384xf32>
    %16 = arith.mulf %15, %14 : vector<1x384xf32>
    %17 = vector.broadcast %16 : vector<1x384xf32> to vector<16x384xf32>
    %18 = arith.addf %13, %17 : vector<16x384xf32>
    %19 = arith.mulf %13, %13 : vector<16x384xf32>
    %cst_9 = arith.constant dense<0.000000e+00> : vector<16xf32>
    %20 = vector.multi_reduction <add>, %19, %cst_9 [1] : vector<16x384xf32> to vector<16xf32>
    %21 = vector.shape_cast %20 : vector<16xf32> to vector<16x1xf32>
    %22 = math.sqrt %21 : vector<16x1xf32>
    %23 = arith.mulf %18, %18 : vector<16x384xf32>
    %cst_10 = arith.constant dense<0.000000e+00> : vector<16xf32>
    %24 = vector.multi_reduction <add>, %23, %cst_10 [1] : vector<16x384xf32> to vector<16xf32>
    %25 = vector.shape_cast %24 : vector<16xf32> to vector<16x1xf32>
    %26 = math.sqrt %25 : vector<16x1xf32>
    %cst_11 = arith.constant 9.99999993E-9 : f32
    %27 = vector.broadcast %cst_11 : f32 to vector<16x1xf32>
    %28 = arith.addf %26, %27 : vector<16x1xf32>
    %29 = arith.divf %22, %28 : vector<16x1xf32>
    %30 = vector.broadcast %29 : vector<16x1xf32> to vector<16x384xf32>
    %31 = arith.mulf %18, %30 : vector<16x384xf32>
    %c0_12 = arith.constant 0 : index
    %c0_13 = arith.constant 0 : index
    %32 = vector.load %arg4[%c0_12, %c0_13] : memref<16x384xf32, #tpu.memory_space<vmem>>, vector<16x384xf32>
    tpu.vector_store %arg4[%c0_12, %c0_13], %31 {strides = array<i32>} : memref<16x384xf32, #tpu.memory_space<vmem>>, vector<16x384xf32>,
    return
  }
  func.func @transform_0(%arg0: i32) -> (i32, i32) {
    %c0_i32 = arith.constant 0 : i32
    %c0_i32_0 = arith.constant 0 : i32
    return %arg0, %c0_i32 : i32, i32
  }
  func.func @transform_1(%arg0: i32) -> (i32, i32) {
    %c0_i32 = arith.constant 0 : i32
    %c0_i32_0 = arith.constant 0 : i32
    %c0_i32_1 = arith.constant 0 : i32
    return %c0_i32, %c0_i32_0 : i32, i32
  }
  func.func @transform_2(%arg0: i32) -> (i32, i32) {
    %c0_i32 = arith.constant 0 : i32
    %c0_i32_0 = arith.constant 0 : i32
    %c0_i32_1 = arith.constant 0 : i32
    return %c0_i32, %c0_i32_0 : i32, i32
  }
  func.func @transform_3(%arg0: i32) -> (i32, i32) {
    %c0_i32 = arith.constant 0 : i32
    %c0_i32_0 = arith.constant 0 : i32
    return %arg0, %c0_i32 : i32, i32
  }
}

</mosaic_0001>

<llo_original>
// kernel: tpu_custom_call.1
$region0: #{tpu_custom_call.1}
  #allocation0 [shape = 'u32[]', space=smem, size = 0x4, offset = 0x4, fixed_abs, tag = 'smem constant byte address 0x4 - core index']
  #allocation1 [shape = 'u32[72,128]{1,0:T(1,128)}', space=vmem, size = 0x9000, scoped, tag = 'internal scratch']
  %s0 = inlined_call_operand.hbm [shape: f32[16,384], index: 0, kind: input, shape index: {}]
  %s1 = inlined_call_operand.hbm [shape: f32[384,384], index: 1, kind: input, shape index: {}]
  %s2 = inlined_call_operand.hbm [shape: f32[1,384], index: 2, kind: input, shape index: {}]
  %s3 = inlined_call_operand.hbm [shape: f32[16,384], index: 3, kind: output, shape index: {}]
  %s4 = sld [smem:[#allocation0]]
  $region34: #{tpu_custom_call.1} parent=0
    _
  %s6 = ssub.s32 1, %s4
  %s7 = scalar_select 0, %s6, %s4
  $region1: #{tpu_custom_call.1} parent=0
    #allocation2 [shape = 'u8[24576]{0}', space=vmem, size = 0x6000, scoped, tag = 'input window, operand 0, single buffered']
    #allocation3 [shape = 's32[1]{0}', space=sflag, size = 0x4, scoped, tag = 'scoped memory for tpu_custom_call.1']
    #allocation4 [shape = 's32[1]{0}', space=sflag, size = 0x4, scoped, tag = 'scoped memory for tpu_custom_call.1']
    #allocation5 [shape = 'u8[589824]{0}', space=vmem, size = 0x90000, scoped, tag = 'input window, operand 1, single buffered']
    #allocation6 [shape = 's32[1]{0}', space=sflag, size = 0x4, scoped, tag = 'scoped memory for tpu_custom_call.1']
    #allocation7 [shape = 'u8[1536]{0}', space=vmem, size = 0x800, scoped, tag = 'input window, operand 2, single buffered']
    #allocation8 [shape = 'u8[24576]{0}', space=vmem, size = 0x6000, scoped, tag = 'output window, operand 0, single buffered']
    %8 = vsyncpa [#allocation3], 0
    %9 = vsyncpa [#allocation6], 0
    %10 = vsyncpa [#allocation4], 0
    // Predicated region
    $region2: #{tpu_custom_call.1} parent=1 // pred_check
      _
    $region3: #{tpu_custom_call.1} parent=1 // pred_check_branch
      %12 = sbr.rel (0) target = $region5
    $region4: #{tpu_custom_call.1} parent=1 // pred_region
      %14 = vsyncadd [#allocation3], 0
      %s15 = sshll.u32 %s0, 4
      %s16 = int_to_ptr.hbm [resolvable:$true] %s15
      %s17 = sshll.u32 [#allocation2], 4
      %s18 = int_to_ptr.vmem [resolvable:$true] %s17
      %23 = dma.hbm_to_vmem [thread:$0]  %s16, 768, %s18, [#allocation3], 384, 384, 24
    $region5: #{tpu_custom_call.1} parent=1 // pred_fallthru
      _
    // Predicated region
    $region6: #{tpu_custom_call.1} parent=1 // pred_check
      _
    $region7: #{tpu_custom_call.1} parent=1 // pred_check_branch
      %25 = sbr.rel (0) target = $region9
    $region8: #{tpu_custom_call.1} parent=1 // pred_region
      %27 = vsyncadd [#allocation6], 0
      %s28 = sshll.u32 %s1, 4
      %s29 = int_to_ptr.hbm [resolvable:$true] %s28
      %s30 = sshll.u32 [#allocation5], 4
      %s31 = int_to_ptr.vmem [resolvable:$true] %s30
      %36 = dma.hbm_to_vmem [thread:$0]  %s29, 18432, %s31, [#allocation6], 384, 384, 24
    $region9: #{tpu_custom_call.1} parent=1 // pred_fallthru
      _
    // Predicated region
    $region10: #{tpu_custom_call.1} parent=1 // pred_check
      _
    $region11: #{tpu_custom_call.1} parent=1 // pred_check_branch
      %38 = sbr.rel (0) target = $region13
    $region12: #{tpu_custom_call.1} parent=1 // pred_region
      %40 = vsyncadd [#allocation6], 0
      %s42 = sshll.u32 %s2, 4
      %s43 = int_to_ptr.hbm [resolvable:$true] %s42
      %s44 = sshll.u32 [#allocation7], 4
      %s45 = int_to_ptr.vmem [resolvable:$true] %s44
      %47 = dma.hbm_to_vmem [thread:$0]  %s43, 48, %s45, [#allocation6]
    $region13: #{tpu_custom_call.1} parent=1 // pred_fallthru
      _
    // Predicated region
    $region14: #{tpu_custom_call.1} parent=1 // pred_check
      _
    $region15: #{tpu_custom_call.1} parent=1 // pred_check_branch
      %49 = sbr.rel (0) target = $region17
    $region16: #{tpu_custom_call.1} parent=1 // pred_region
      %51 = dma.done [#allocation3], 768
    $region17: #{tpu_custom_call.1} parent=1 // pred_fallthru
      _
    // Predicated region
    $region18: #{tpu_custom_call.1} parent=1 // pred_check
      _
    $region19: #{tpu_custom_call.1} parent=1 // pred_check_branch
      %53 = sbr.rel (0) target = $region21
    $region20: #{tpu_custom_call.1} parent=1 // pred_region
      %55 = dma.done [#allocation6], 18432
    $region21: #{tpu_custom_call.1} parent=1 // pred_fallthru
      _
    // Predicated region
    $region22: #{tpu_custom_call.1} parent=1 // pred_check
      _
    $region23: #{tpu_custom_call.1} parent=1 // pred_check_branch
      %57 = sbr.rel (0) target = $region25
    $region24: #{tpu_custom_call.1} parent=1 // pred_region
      %59 = dma.done [#allocation6], 48
    $region25: #{tpu_custom_call.1} parent=1 // pred_fallthru
      _
    %v60 = vld [vmem:[#allocation2] sm:$0xff]
    %v61 = vld [vmem:[#allocation2 + $0x8] sm:$0xff]
    %v62 = vld [vmem:[#allocation2 + $0x10] sm:$0xff]
    %v63 = vld [vmem:[#allocation2 + $0x18] sm:$0xff]
    %v64 = vld [vmem:[#allocation2 + $0x20] sm:$0xff]
    %v65 = vld [vmem:[#allocation2 + $0x28] sm:$0xff]
    %v66 = vmul.f32 %v60, %v60
    %v67 = vmul.f32 %v61, %v61
    %v68 = vmul.f32 %v62, %v62
    %v69 = vmul.f32 %v63, %v63
    %v70 = vmul.f32 %v64, %v64
    %v71 = vmul.f32 %v65, %v65
    %v72 = vadd.f32 %v66, %v67
    %v73 = vadd.f32 %v72, %v68
    %74 = vadd.xlane.f32.xlu0 %v73
    %v75 = vpop.xlane.xlu0 %74
    %v76 = vadd.f32 %v69, %v70
    %v77 = vadd.f32 %v76, %v71
    %78 = vadd.xlane.f32.xlu0 %v77
    %v79 = vpop.xlane.xlu0 %78
    %v80 = vrcp.pop 384.0
    %v81 = vmul.f32 384.0, %v80
    %v82 = vsub.f32 1.0, %v81
    %v83 = vmul.f32 %v80, %v82
    %v84 = vadd.f32 %v80, %v83
    %vm85 = vweird.f32 %v80
    %v86 = vsel %vm85, %v80, %v84
    %v87 = vmul.f32 %v75, %v86
    %v88 = vmul.f32 %v79, %v86
    %v89 = vadd.f32 %v87, 1e-06
    %v90 = vadd.f32 %v88, 1e-06
    %v91 = vrsqrt.pop %v89
    %v92 = vmul.f32 %v91, %v89
    %v93 = vmul.f32 %v92, %v91
    %v94 = vmul.f32 0.5, %v93
    %v95 = vsub.f32 1.5, %v94
    %v96 = vmul.f32 %v91, %v95
    %vm97 = vweird.f32 %v89
    %vm98 = vweird.f32 %v91
    %vm99 = vmor %vm97, %vm98
    %v100 = vsel %vm99, %v91, %v96
    %v101 = vrsqrt.pop %v90
    %v102 = vmul.f32 %v101, %v90
    %v103 = vmul.f32 %v102, %v101
    %v104 = vmul.f32 0.5, %v103
    %v105 = vsub.f32 1.5, %v104
    %v106 = vmul.f32 %v101, %v105
    %vm107 = vweird.f32 %v90
    %vm108 = vweird.f32 %v101
    %vm109 = vmor %vm107, %vm108
    %v110 = vsel %vm109, %v101, %v106
    %v111 = vmul.f32 %v60, %v100
    %v112 = vmul.f32 %v61, %v100
    %v113 = vmul.f32 %v62, %v100
    %v114 = vmul.f32 %v63, %v110
    %v115 = vmul.f32 %v64, %v110
    %v116 = vmul.f32 %v65, %v110
    %v117 = vld [vmem:[#allocation5] sm:$0xff]
    %v118 = vld [vmem:[#allocation5 + $0x8] sm:$0xff]
    %v119 = vld [vmem:[#allocation5 + $0x10] sm:$0xff]
    %v120 = vld [vmem:[#allocation5 + $0x18] sm:$0xff]
    %v121 = vld [vmem:[#allocation5 + $0x20] sm:$0xff]
    %v122 = vld [vmem:[#allocation5 + $0x28] sm:$0xff]
    %v123 = vld [vmem:[#allocation5 + $0x30] sm:$0xff]
    %v124 = vld [vmem:[#allocation5 + $0x38] sm:$0xff]
    %v125 = vld [vmem:[#allocation5 + $0x40] sm:$0xff]
    %v126 = vld [vmem:[#allocation5 + $0x48] sm:$0xff]
    %v127 = vld [vmem:[#allocation5 + $0x50] sm:$0xff]
    %v128 = vld [vmem:[#allocation5 + $0x58] sm:$0xff]
    %v129 = vld [vmem:[#allocation5 + $0x60] sm:$0xff]
    %v130 = vld [vmem:[#allocation5 + $0x68] sm:$0xff]
    %v131 = vld [vmem:[#allocation5 + $0x70] sm:$0xff]
    %v132 = vld [vmem:[#allocation5 + $0x78] sm:$0xff]
    %v133 = vld [vmem:[#allocation5 + $0x80] sm:$0xff]
    %v134 = vld [vmem:[#allocation5 + $0x88] sm:$0xff]
    %v135 = vld [vmem:[#allocation5 + $0x90] sm:$0xff]
    %v136 = vld [vmem:[#allocation5 + $0x98] sm:$0xff]
    %v137 = vld [vmem:[#allocation5 + $0xa0] sm:$0xff]
    %v138 = vld [vmem:[#allocation5 + $0xa8] sm:$0xff]
    %v139 = vld [vmem:[#allocation5 + $0xb0] sm:$0xff]
    %v140 = vld [vmem:[#allocation5 + $0xb8] sm:$0xff]
    %v141 = vld [vmem:[#allocation5 + $0xc0] sm:$0xff]
    %v142 = vld [vmem:[#allocation5 + $0xc8] sm:$0xff]
    %v143 = vld [vmem:[#allocation5 + $0xd0] sm:$0xff]
    %v144 = vld [vmem:[#allocation5 + $0xd8] sm:$0xff]
    %v145 = vld [vmem:[#allocation5 + $0xe0] sm:$0xff]
    %v146 = vld [vmem:[#allocation5 + $0xe8] sm:$0xff]
    %v147 = vld [vmem:[#allocation5 + $0xf0] sm:$0xff]
    %v148 = vld [vmem:[#allocation5 + $0xf8] sm:$0xff]
    %v149 = vld [vmem:[#allocation5 + $0x100] sm:$0xff]
    %v150 = vld [vmem:[#allocation5 + $0x108] sm:$0xff]
    %v151 = vld [vmem:[#allocation5 + $0x110] sm:$0xff]
    %v152 = vld [vmem:[#allocation5 + $0x118] sm:$0xff]
    %v153 = vld [vmem:[#allocation5 + $0x120] sm:$0xff]
    %v154 = vld [vmem:[#allocation5 + $0x128] sm:$0xff]
    %v155 = vld [vmem:[#allocation5 + $0x130] sm:$0xff]
    %v156 = vld [vmem:[#allocation5 + $0x138] sm:$0xff]
    %v157 = vld [vmem:[#allocation5 + $0x140] sm:$0xff]
    %v158 = vld [vmem:[#allocation5 + $0x148] sm:$0xff]
    %v159 = vld [vmem:[#allocation5 + $0x150] sm:$0xff]
    %v160 = vld [vmem:[#allocation5 + $0x158] sm:$0xff]
    %v161 = vld [vmem:[#allocation5 + $0x160] sm:$0xff]
    %v162 = vld [vmem:[#allocation5 + $0x168] sm:$0xff]
    %v163 = vld [vmem:[#allocation5 + $0x170] sm:$0xff]
    %v164 = vld [vmem:[#allocation5 + $0x178] sm:$0xff]
    %v165 = vld [vmem:[#allocation5 + $0x180] sm:$0xff]
    %v166 = vld [vmem:[#allocation5 + $0x188] sm:$0xff]
    %v167 = vld [vmem:[#allocation5 + $0x190] sm:$0xff]
    %v168 = vld [vmem:[#allocation5 + $0x198] sm:$0xff]
    %v169 = vld [vmem:[#allocation5 + $0x1a0] sm:$0xff]
    %v170 = vld [vmem:[#allocation5 + $0x1a8] sm:$0xff]
    %v171 = vld [vmem:[#allocation5 + $0x1b0] sm:$0xff]
    %v172 = vld [vmem:[#allocation5 + $0x1b8] sm:$0xff]
    %v173 = vld [vmem:[#allocation5 + $0x1c0] sm:$0xff]
    %v174 = vld [vmem:[#allocation5 + $0x1c8] sm:$0xff]
    %v175 = vld [vmem:[#allocation5 + $0x1d0] sm:$0xff]
    %v176 = vld [vmem:[#allocation5 + $0x1d8] sm:$0xff]
    %v177 = vld [vmem:[#allocation5 + $0x1e0] sm:$0xff]
    %v178 = vld [vmem:[#allocation5 + $0x1e8] sm:$0xff]
    %v179 = vld [vmem:[#allocation5 + $0x1f0] sm:$0xff]
    %v180 = vld [vmem:[#allocation5 + $0x1f8] sm:$0xff]
    %v181 = vld [vmem:[#allocation5 + $0x200] sm:$0xff]
    %v182 = vld [vmem:[#allocation5 + $0x208] sm:$0xff]
    %v183 = vld [vmem:[#allocation5 + $0x210] sm:$0xff]
    %v184 = vld [vmem:[#allocation5 + $0x218] sm:$0xff]
    %v185 = vld [vmem:[#allocation5 + $0x220] sm:$0xff]
    %v186 = vld [vmem:[#allocation5 + $0x228] sm:$0xff]
    %v187 = vld [vmem:[#allocation5 + $0x230] sm:$0xff]
    %v188 = vld [vmem:[#allocation5 + $0x238] sm:$0xff]
    %v189 = vld [vmem:[#allocation5 + $0x240] sm:$0xff]
    %v190 = vld [vmem:[#allocation5 + $0x248] sm:$0xff]
    %v191 = vld [vmem:[#allocation5 + $0x250] sm:$0xff]
    %v192 = vld [vmem:[#allocation5 + $0x258] sm:$0xff]
    %v193 = vld [vmem:[#allocation5 + $0x260] sm:$0xff]
    %v194 = vld [vmem:[#allocation5 + $0x268] sm:$0xff]
    %v195 = vld [vmem:[#allocation5 + $0x270] sm:$0xff]
    %v196 = vld [vmem:[#allocation5 + $0x278] sm:$0xff]
    %v197 = vld [vmem:[#allocation5 + $0x280] sm:$0xff]
    %v198 = vld [vmem:[#allocation5 + $0x288] sm:$0xff]
    %v199 = vld [vmem:[#allocation5 + $0x290] sm:$0xff]
    %v200 = vld [vmem:[#allocation5 + $0x298] sm:$0xff]
    %v201 = vld [vmem:[#allocation5 + $0x2a0] sm:$0xff]
    %v202 = vld [vmem:[#allocation5 + $0x2a8] sm:$0xff]
    %v203 = vld [vmem:[#allocation5 + $0x2b0] sm:$0xff]
    %v204 = vld [vmem:[#allocation5 + $0x2b8] sm:$0xff]
    %v205 = vld [vmem:[#allocation5 + $0x2c0] sm:$0xff]
    %v206 = vld [vmem:[#allocation5 + $0x2c8] sm:$0xff]
    %v207 = vld [vmem:[#allocation5 + $0x2d0] sm:$0xff]
    %v208 = vld [vmem:[#allocation5 + $0x2d8] sm:$0xff]
    %v209 = vld [vmem:[#allocation5 + $0x2e0] sm:$0xff]
    %v210 = vld [vmem:[#allocation5 + $0x2e8] sm:$0xff]
    %v211 = vld [vmem:[#allocation5 + $0x2f0] sm:$0xff]
    %v212 = vld [vmem:[#allocation5 + $0x2f8] sm:$0xff]
    %v213 = vld [vmem:[#allocation5 + $0x300] sm:$0xff]
    %v214 = vld [vmem:[#allocation5 + $0x308] sm:$0xff]
    %v215 = vld [vmem:[#allocation5 + $0x310] sm:$0xff]
    %v216 = vld [vmem:[#allocation5 + $0x318] sm:$0xff]
    %v217 = vld [vmem:[#allocation5 + $0x320] sm:$0xff]
    %v218 = vld [vmem:[#allocation5 + $0x328] sm:$0xff]
    %v219 = vld [vmem:[#allocation5 + $0x330] sm:$0xff]
    %v220 = vld [vmem:[#allocation5 + $0x338] sm:$0xff]
    %v221 = vld [vmem:[#allocation5 + $0x340] sm:$0xff]
    %v222 = vld [vmem:[#allocation5 + $0x348] sm:$0xff]
    %v223 = vld [vmem:[#allocation5 + $0x350] sm:$0xff]
    %v224 = vld [vmem:[#allocation5 + $0x358] sm:$0xff]
    %v225 = vld [vmem:[#allocation5 + $0x360] sm:$0xff]
    %v226 = vld [vmem:[#allocation5 + $0x368] sm:$0xff]
    %v227 = vld [vmem:[#allocation5 + $0x370] sm:$0xff]
    %v228 = vld [vmem:[#allocation5 + $0x378] sm:$0xff]
    %v229 = vld [vmem:[#allocation5 + $0x380] sm:$0xff]
    %v230 = vld [vmem:[#allocation5 + $0x388] sm:$0xff]
    %v231 = vld [vmem:[#allocation5 + $0x390] sm:$0xff]
    %v232 = vld [vmem:[#allocation5 + $0x398] sm:$0xff]
    %v233 = vld [vmem:[#allocation5 + $0x3a0] sm:$0xff]
    %v234 = vld [vmem:[#allocation5 + $0x3a8] sm:$0xff]
    %v235 = vld [vmem:[#allocation5 + $0x3b0] sm:$0xff]
    %v236 = vld [vmem:[#allocation5 + $0x3b8] sm:$0xff]
    %v237 = vld [vmem:[#allocation5 + $0x3c0] sm:$0xff]
    %v238 = vld [vmem:[#allocation5 + $0x3c8] sm:$0xff]
    %v239 = vld [vmem:[#allocation5 + $0x3d0] sm:$0xff]
    %v240 = vld [vmem:[#allocation5 + $0x3d8] sm:$0xff]
    %v241 = vld [vmem:[#allocation5 + $0x3e0] sm:$0xff]
    %v242 = vld [vmem:[#allocation5 + $0x3e8] sm:$0xff]
    %v243 = vld [vmem:[#allocation5 + $0x3f0] sm:$0xff]
    %v244 = vld [vmem:[#allocation5 + $0x3f8] sm:$0xff]
    %v245 = vld [vmem:[#allocation5 + $0x400] sm:$0xff]
    %v246 = vld [vmem:[#allocation5 + $0x408] sm:$0xff]
    %v247 = vld [vmem:[#allocation5 + $0x410] sm:$0xff]
    %v248 = vld [vmem:[#allocation5 + $0x418] sm:$0xff]
    %v249 = vld [vmem:[#allocation5 + $0x420] sm:$0xff]
    %v250 = vld [vmem:[#allocation5 + $0x428] sm:$0xff]
    %v251 = vld [vmem:[#allocation5 + $0x430] sm:$0xff]
    %v252 = vld [vmem:[#allocation5 + $0x438] sm:$0xff]
    %v253 = vld [vmem:[#allocation5 + $0x440] sm:$0xff]
    %v254 = vld [vmem:[#allocation5 + $0x448] sm:$0xff]
    %v255 = vld [vmem:[#allocation5 + $0x450] sm:$0xff]
    %v256 = vld [vmem:[#allocation5 + $0x458] sm:$0xff]
    %v257 = vld [vmem:[#allocation5 + $0x460] sm:$0xff]
    %v258 = vld [vmem:[#allocation5 + $0x468] sm:$0xff]
    %v259 = vld [vmem:[#allocation5 + $0x470] sm:$0xff]
    %v260 = vld [vmem:[#allocation5 + $0x478] sm:$0xff]
    %261 = vmatpush.msra.mxu0 %v162
    %262 = vmatpush.msra.mxu0 %v159
    %263 = vmatpush.msra.mxu0 %v156
    %264 = vmatpush.msra.mxu0 %v153
    %265 = vmatpush.msra.mxu0 %v150
    %266 = vmatpush.msra.mxu0 %v147
    %267 = vmatpush.msra.mxu0 %v144
    %268 = vmatpush.msra.mxu0 %v141
    %269 = vmatpush.msra.mxu0 %v138
    %270 = vmatpush.msra.mxu0 %v135
    %271 = vmatpush.msra.mxu0 %v132
    %272 = vmatpush.msra.mxu0 %v129
    %273 = vmatpush.msra.mxu0 %v126
    %274 = vmatpush.msra.mxu0 %v123
    %275 = vmatpush.msra.mxu0 %v120
    %276 = vmatpush.msra.mxu0 %v117
    %277 = vmatmul.f32.gmra.mxu0 %v111
    %v278 = vpop.f32.mrf.mxu0
    %v279 = vadd.f32 %v60, %v278
    %280 = vmatmul.f32.gmra.mxu0 %v114
    %v281 = vpop.f32.mrf.mxu0
    %v282 = vadd.f32 %v63, %v281
    %283 = vdwg.mxu0
    %284 = vmatpush.msra.mxu0 %v210
    %285 = vmatpush.msra.mxu0 %v207
    %286 = vmatpush.msra.mxu0 %v204
    %287 = vmatpush.msra.mxu0 %v201
    %288 = vmatpush.msra.mxu0 %v198
    %289 = vmatpush.msra.mxu0 %v195
    %290 = vmatpush.msra.mxu0 %v192
    %291 = vmatpush.msra.mxu0 %v189
    %292 = vmatpush.msra.mxu0 %v186
    %293 = vmatpush.msra.mxu0 %v183
    %294 = vmatpush.msra.mxu0 %v180
    %295 = vmatpush.msra.mxu0 %v177
    %296 = vmatpush.msra.mxu0 %v174
    %297 = vmatpush.msra.mxu0 %v171
    %298 = vmatpush.msra.mxu0 %v168
    %299 = vmatpush.msra.mxu0 %v165
    %300 = vmatmul.f32.gmra.mxu0 %v112
    %v301 = vpop.f32.mrf.mxu0
    %v302 = vadd.f32 %v279, %v301
    %303 = vmatmul.f32.gmra.mxu0 %v115
    %v304 = vpop.f32.mrf.mxu0
    %v305 = vadd.f32 %v282, %v304
    %306 = vdwg.mxu0
    %307 = vmatpush.msra.mxu0 %v258
    %308 = vmatpush.msra.mxu0 %v255
    %309 = vmatpush.msra.mxu0 %v252
    %310 = vmatpush.msra.mxu0 %v249
    %311 = vmatpush.msra.mxu0 %v246
    %312 = vmatpush.msra.mxu0 %v243
    %313 = vmatpush.msra.mxu0 %v240
    %314 = vmatpush.msra.mxu0 %v237
    %315 = vmatpush.msra.mxu0 %v234
    %316 = vmatpush.msra.mxu0 %v231
    %317 = vmatpush.msra.mxu0 %v228
    %318 = vmatpush.msra.mxu0 %v225
    %319 = vmatpush.msra.mxu0 %v222
    %320 = vmatpush.msra.mxu0 %v219
    %321 = vmatpush.msra.mxu0 %v216
    %322 = vmatpush.msra.mxu0 %v213
    %323 = vmatmul.f32.gmra.mxu0 %v113
    %v324 = vpop.f32.mrf.mxu0
    %v325 = vadd.f32 %v302, %v324
    %326 = vmatmul.f32.gmra.mxu0 %v116
    %v327 = vpop.f32.mrf.mxu0
    %v328 = vadd.f32 %v305, %v327
    %329 = vdwg.mxu0
    %330 = vmatpush.msra.mxu0 %v163
    %331 = vmatpush.msra.mxu0 %v160
    %332 = vmatpush.msra.mxu0 %v157
    %333 = vmatpush.msra.mxu0 %v154
    %334 = vmatpush.msra.mxu0 %v151
    %335 = vmatpush.msra.mxu0 %v148
    %336 = vmatpush.msra.mxu0 %v145
    %337 = vmatpush.msra.mxu0 %v142
    %338 = vmatpush.msra.mxu0 %v139
    %339 = vmatpush.msra.mxu0 %v136
    %340 = vmatpush.msra.mxu0 %v133
    %341 = vmatpush.msra.mxu0 %v130
    %342 = vmatpush.msra.mxu0 %v127
    %343 = vmatpush.msra.mxu0 %v124
    %344 = vmatpush.msra.mxu0 %v121
    %345 = vmatpush.msra.mxu0 %v118
    %346 = vmatmul.f32.gmra.mxu0 %v111
    %v347 = vpop.f32.mrf.mxu0
    %v348 = vadd.f32 %v61, %v347
    %349 = vmatmul.f32.gmra.mxu0 %v114
    %v350 = vpop.f32.mrf.mxu0
    %v351 = vadd.f32 %v64, %v350
    %352 = vdwg.mxu0
    %353 = vmatpush.msra.mxu0 %v211
    %354 = vmatpush.msra.mxu0 %v208
    %355 = vmatpush.msra.mxu0 %v205
    %356 = vmatpush.msra.mxu0 %v202
    %357 = vmatpush.msra.mxu0 %v199
    %358 = vmatpush.msra.mxu0 %v196
    %359 = vmatpush.msra.mxu0 %v193
    %360 = vmatpush.msra.mxu0 %v190
    %361 = vmatpush.msra.mxu0 %v187
    %362 = vmatpush.msra.mxu0 %v184
    %363 = vmatpush.msra.mxu0 %v181
    %364 = vmatpush.msra.mxu0 %v178
    %365 = vmatpush.msra.mxu0 %v175
    %366 = vmatpush.msra.mxu0 %v172
    %367 = vmatpush.msra.mxu0 %v169
    %368 = vmatpush.msra.mxu0 %v166
    %369 = vmatmul.f32.gmra.mxu0 %v112
    %v370 = vpop.f32.mrf.mxu0
    %v371 = vadd.f32 %v348, %v370
    %372 = vmatmul.f32.gmra.mxu0 %v115
    %v373 = vpop.f32.mrf.mxu0
    %v374 = vadd.f32 %v351, %v373
    %375 = vdwg.mxu0
    %376 = vmatpush.msra.mxu0 %v259
    %377 = vmatpush.msra.mxu0 %v256
    %378 = vmatpush.msra.mxu0 %v253
    %379 = vmatpush.msra.mxu0 %v250
    %380 = vmatpush.msra.mxu0 %v247
    %381 = vmatpush.msra.mxu0 %v244
    %382 = vmatpush.msra.mxu0 %v241
    %383 = vmatpush.msra.mxu0 %v238
    %384 = vmatpush.msra.mxu0 %v235
    %385 = vmatpush.msra.mxu0 %v232
    %386 = vmatpush.msra.mxu0 %v229
    %387 = vmatpush.msra.mxu0 %v226
    %388 = vmatpush.msra.mxu0 %v223
    %389 = vmatpush.msra.mxu0 %v220
    %390 = vmatpush.msra.mxu0 %v217
    %391 = vmatpush.msra.mxu0 %v214
    %392 = vmatmul.f32.gmra.mxu0 %v113
    %v393 = vpop.f32.mrf.mxu0
    %v394 = vadd.f32 %v371, %v393
    %395 = vmatmul.f32.gmra.mxu0 %v116
    %v396 = vpop.f32.mrf.mxu0
    %v397 = vadd.f32 %v374, %v396
    %398 = vdwg.mxu0
    %399 = vmatpush.msra.mxu0 %v164
    %400 = vmatpush.msra.mxu0 %v161
    %401 = vmatpush.msra.mxu0 %v158
    %402 = vmatpush.msra.mxu0 %v155
    %403 = vmatpush.msra.mxu0 %v152
    %404 = vmatpush.msra.mxu0 %v149
    %405 = vmatpush.msra.mxu0 %v146
    %406 = vmatpush.msra.mxu0 %v143
    %407 = vmatpush.msra.mxu0 %v140
    %408 = vmatpush.msra.mxu0 %v137
    %409 = vmatpush.msra.mxu0 %v134
    %410 = vmatpush.msra.mxu0 %v131
    %411 = vmatpush.msra.mxu0 %v128
    %412 = vmatpush.msra.mxu0 %v125
    %413 = vmatpush.msra.mxu0 %v122
    %414 = vmatpush.msra.mxu0 %v119
    %415 = vmatmul.f32.gmra.mxu0 %v111
    %v416 = vpop.f32.mrf.mxu0
    %v417 = vadd.f32 %v62, %v416
    %418 = vmatmul.f32.gmra.mxu0 %v114
    %v419 = vpop.f32.mrf.mxu0
    %v420 = vadd.f32 %v65, %v419
    %421 = vdwg.mxu0
    %422 = vmatpush.msra.mxu0 %v212
    %423 = vmatpush.msra.mxu0 %v209
    %424 = vmatpush.msra.mxu0 %v206
    %425 = vmatpush.msra.mxu0 %v203
    %426 = vmatpush.msra.mxu0 %v200
    %427 = vmatpush.msra.mxu0 %v197
    %428 = vmatpush.msra.mxu0 %v194
    %429 = vmatpush.msra.mxu0 %v191
    %430 = vmatpush.msra.mxu0 %v188
    %431 = vmatpush.msra.mxu0 %v185
    %432 = vmatpush.msra.mxu0 %v182
    %433 = vmatpush.msra.mxu0 %v179
    %434 = vmatpush.msra.mxu0 %v176
    %435 = vmatpush.msra.mxu0 %v173
    %436 = vmatpush.msra.mxu0 %v170
    %437 = vmatpush.msra.mxu0 %v167
    %438 = vmatmul.f32.gmra.mxu0 %v112
    %v439 = vpop.f32.mrf.mxu0
    %v440 = vadd.f32 %v417, %v439
    %441 = vmatmul.f32.gmra.mxu0 %v115
    %v442 = vpop.f32.mrf.mxu0
    %v443 = vadd.f32 %v420, %v442
    %444 = vdwg.mxu0
    %445 = vmatpush.msra.mxu0 %v260
    %446 = vmatpush.msra.mxu0 %v257
    %447 = vmatpush.msra.mxu0 %v254
    %448 = vmatpush.msra.mxu0 %v251
    %449 = vmatpush.msra.mxu0 %v248
    %450 = vmatpush.msra.mxu0 %v245
    %451 = vmatpush.msra.mxu0 %v242
    %452 = vmatpush.msra.mxu0 %v239
    %453 = vmatpush.msra.mxu0 %v236
    %454 = vmatpush.msra.mxu0 %v233
    %455 = vmatpush.msra.mxu0 %v230
    %456 = vmatpush.msra.mxu0 %v227
    %457 = vmatpush.msra.mxu0 %v224
    %458 = vmatpush.msra.mxu0 %v221
    %459 = vmatpush.msra.mxu0 %v218
    %460 = vmatpush.msra.mxu0 %v215
    %461 = vmatmul.f32.gmra.mxu0 %v113
    %v462 = vpop.f32.mrf.mxu0
    %v463 = vadd.f32 %v440, %v462
    %464 = vmatmul.f32.gmra.mxu0 %v116
    %v465 = vpop.f32.mrf.mxu0
    %v466 = vadd.f32 %v443, %v465
    %467 = vdwg.mxu0
    %v468 = vld [vmem:[#allocation7] sm:$0x7]
    %v469 = vmul.f32 %v468, 2.0
    %v471 = vperm.slane %v469, 0
    %v472 = vperm.slane %v469, 1
    %v473 = vperm.slane %v469, 2
    %v477 = vadd.f32 %v325, %v471
    %v478 = vadd.f32 %v394, %v472
    %v479 = vadd.f32 %v463, %v473
    %v480 = vadd.f32 %v328, %v471
    %v481 = vadd.f32 %v397, %v472
    %v482 = vadd.f32 %v466, %v473
    %v483 = vmul.f32 %v325, %v325
    %v484 = vmul.f32 %v394, %v394
    %v485 = vmul.f32 %v463, %v463
    %v486 = vmul.f32 %v328, %v328
    %v487 = vmul.f32 %v397, %v397
    %v488 = vmul.f32 %v466, %v466
    %v489 = vadd.f32 %v483, %v484
    %v490 = vadd.f32 %v489, %v485
    %491 = vadd.xlane.f32.xlu0 %v490
    %v492 = vpop.xlane.xlu0 %491
    %v493 = vadd.f32 %v486, %v487
    %v494 = vadd.f32 %v493, %v488
    %495 = vadd.xlane.f32.xlu0 %v494
    %v496 = vpop.xlane.xlu0 %495
    %v497 = vrsqrt.pop %v492
    %v498 = vmul.f32 %v497, %v492
    %v499 = vmul.f32 %v498, %v497
    %v500 = vmul.f32 0.5, %v499
    %v501 = vsub.f32 1.5, %v500
    %v502 = vmul.f32 %v497, %v501
    %v503 = vmul.f32 %v492, %v502
    %vm504 = vcmp.eq.f32.partialorder %v492, inf
    %v505 = vsel %vm504, %v492, %v503
    %vm506 = vcmp.eq.f32.partialorder %v492, 0.0
    %v507 = vand.u32 %v492, 2147483648
    %v508 = vsel %vm506, %v507, %v505
    %v509 = vrsqrt.pop %v496
    %v510 = vmul.f32 %v509, %v496
    %v511 = vmul.f32 %v510, %v509
    %v512 = vmul.f32 0.5, %v511
    %v513 = vsub.f32 1.5, %v512
    %v514 = vmul.f32 %v509, %v513
    %v515 = vmul.f32 %v496, %v514
    %vm516 = vcmp.eq.f32.partialorder %v496, inf
    %v517 = vsel %vm516, %v496, %v515
    %vm518 = vcmp.eq.f32.partialorder %v496, 0.0
    %v519 = vand.u32 %v496, 2147483648
    %v520 = vsel %vm518, %v519, %v517
    %v521 = vmul.f32 %v477, %v477
    %v522 = vmul.f32 %v478, %v478
    %v523 = vmul.f32 %v479, %v479
    %v524 = vmul.f32 %v480, %v480
    %v525 = vmul.f32 %v481, %v481
    %v526 = vmul.f32 %v482, %v482
    %v527 = vadd.f32 %v521, %v522
    %v528 = vadd.f32 %v527, %v523
    %529 = vadd.xlane.f32.xlu0 %v528
    %v530 = vpop.xlane.xlu0 %529
    %v531 = vadd.f32 %v524, %v525
    %v532 = vadd.f32 %v531, %v526
    %533 = vadd.xlane.f32.xlu0 %v532
    %v534 = vpop.xlane.xlu0 %533
    %v535 = vrsqrt.pop %v530
    %v536 = vmul.f32 %v535, %v530
    %v537 = vmul.f32 %v536, %v535
    %v538 = vmul.f32 0.5, %v537
    %v539 = vsub.f32 1.5, %v538
    %v540 = vmul.f32 %v535, %v539
    %v541 = vmul.f32 %v530, %v540
    %vm542 = vcmp.eq.f32.partialorder %v530, inf
    %v543 = vsel %vm542, %v530, %v541
    %vm544 = vcmp.eq.f32.partialorder %v530, 0.0
    %v545 = vand.u32 %v530, 2147483648
    %v546 = vsel %vm544, %v545, %v543
    %v547 = vrsqrt.pop %v534
    %v548 = vmul.f32 %v547, %v534
    %v549 = vmul.f32 %v548, %v547
    %v550 = vmul.f32 0.5, %v549
    %v551 = vsub.f32 1.5, %v550
    %v552 = vmul.f32 %v547, %v551
    %v553 = vmul.f32 %v534, %v552
    %vm554 = vcmp.eq.f32.partialorder %v534, inf
    %v555 = vsel %vm554, %v534, %v553
    %vm556 = vcmp.eq.f32.partialorder %v534, 0.0
    %v557 = vand.u32 %v534, 2147483648
    %v558 = vsel %vm556, %v557, %v555
    %v559 = vadd.f32 %v546, 1e-08
    %v560 = vadd.f32 %v558, 1e-08
    %v561 = vrcp.pop %v559
    %v562 = vmul.f32 %v559, %v561
    %v563 = vsub.f32 1.0, %v562
    %v564 = vmul.f32 %v561, %v563
    %v565 = vadd.f32 %v561, %v564
    %vm566 = vweird.f32 %v559
    %vm567 = vweird.f32 %v561
    %vm568 = vmor %vm566, %vm567
    %v569 = vsel %vm568, %v561, %v565
    %v570 = vand.u32 2147483647, %v559
    %vm571 = vcmp.eq.f32.partialorder %v570, 8.507059e+37
    %v572 = vand.u32 %v559, 2147483648
    %v573 = vor.u32 1.1754944e-38, %v572
    %v574 = vsel %vm571, %v573, %v569
    %v575 = vmul.f32 %v508, %v574
    %v576 = vrcp.pop %v560
    %v577 = vmul.f32 %v560, %v576
    %v578 = vsub.f32 1.0, %v577
    %v579 = vmul.f32 %v576, %v578
    %v580 = vadd.f32 %v576, %v579
    %vm581 = vweird.f32 %v560
    %vm582 = vweird.f32 %v576
    %vm583 = vmor %vm581, %vm582
    %v584 = vsel %vm583, %v576, %v580
    %v585 = vand.u32 2147483647, %v560
    %vm586 = vcmp.eq.f32.partialorder %v585, 8.507059e+37
    %v587 = vand.u32 %v560, 2147483648
    %v588 = vor.u32 1.1754944e-38, %v587
    %v589 = vsel %vm586, %v588, %v584
    %v590 = vmul.f32 %v520, %v589
    %v591 = vmul.f32 %v477, %v575
    %v592 = vmul.f32 %v478, %v575
    %v593 = vmul.f32 %v479, %v575
    %v594 = vmul.f32 %v480, %v590
    %v595 = vmul.f32 %v481, %v590
    %v596 = vmul.f32 %v482, %v590
    %597 = vst [vmem:[#allocation8] sm:$0xff] %v591
    %598 = vst [vmem:[#allocation8 + $0x8] sm:$0xff] %v592
    %599 = vst [vmem:[#allocation8 + $0x10] sm:$0xff] %v593
    %600 = vst [vmem:[#allocation8 + $0x18] sm:$0xff] %v594
    %601 = vst [vmem:[#allocation8 + $0x20] sm:$0xff] %v595
    %602 = vst [vmem:[#allocation8 + $0x28] sm:$0xff] %v596
    // Predicated region
    $region26: #{tpu_custom_call.1} parent=1 // pred_check
      _
    $region27: #{tpu_custom_call.1} parent=1 // pred_check_branch
      %604 = sbr.rel (0) target = $region29
    $region28: #{tpu_custom_call.1} parent=1 // pred_region
      %606 = vsyncadd [#allocation4], 0
      %s607 = sshll.u32 [#allocation8], 4
      %s608 = int_to_ptr.vmem [resolvable:$true] %s607
      %s609 = sshll.u32 %s3, 4
      %s610 = int_to_ptr.hbm [resolvable:$true] %s609
      %615 = dma.vmem_to_hbm [thread:$0]  %s608, 768, %s610, [#allocation4], 384, 384, 24
    $region29: #{tpu_custom_call.1} parent=1 // pred_fallthru
      _
    // Predicated region
    $region30: #{tpu_custom_call.1} parent=1 // pred_check
      _
    $region31: #{tpu_custom_call.1} parent=1 // pred_check_branch
      %617 = sbr.rel (0) target = $region33
    $region32: #{tpu_custom_call.1} parent=1 // pred_region
      %619 = dma.done [#allocation4], 768
    $region33: #{tpu_custom_call.1} parent=1 // pred_fallthru
      _
    %620 = vsyncpa [#allocation3], 1
    %621 = vsyncpa [#allocation6], 1
    %622 = vsyncpa [#allocation4], 1

</llo_original>
